<compile_context>
chip_gen: v5e
topology: v5e:2x2
jax: 0.10.0
libtpu: 0.0.40
codegen_flags: <defaults>
</compile_context>

<pallas_src>
import functools

import jax
import jax.numpy as jnp
from jax.experimental import pallas as pl
from jax.experimental.pallas import tpu as pltpu

_LANES = 128
_SUBLANES = 8


def _round_up(x, m):
    return (x + m - 1) // m * m


def _vmem_cap_bytes():
    """Generation-aware VMEM cap: v7x has 64 MiB/core, v5e/v6e have 128 MiB."""
    try:
        kind = jax.devices()[0].device_kind.lower()
    except Exception:  # pragma: no cover - defensive
        kind = ""
    if "v7" in kind:
        return 48 * 1024 * 1024
    return 100 * 1024 * 1024


def _bigger_nn_kernel(x_ref, w1_ref, b1_ref, w2_ref, b2_ref, wf_ref, bf_ref,
                      o_ref, h_ref, *, lb, single_layer_block):
    """One (batch tile, layer block) grid step: lb x [fc2(relu(fc1(.)))]."""
    lblk = pl.program_id(1)
    wdt = w1_ref.dtype  # f32 or bf16 streamed weights

    if single_layer_block:
        # Whole layer stack handled in this step: feed fc1 straight from x,
        # carry h as a value (no VMEM round-trip through the scratch).
        h = x_ref[...]
    else:
        # First layer block starts from x; later blocks resume from h scratch.
        # (Select instead of copy: avoids a TBxD_pad store+reload at block 0.)
        h = jnp.where(lblk == 0, x_ref[...], h_ref[...])

    # lb layers per grid step, statically unrolled; the weight block for all
    # lb layers is already resident in VMEM.
    for j in range(lb):
        h1 = jnp.dot(h.astype(wdt), w1_ref[j],
                     preferred_element_type=jnp.float32)
        h1 = jnp.maximum(h1 + b1_ref[j], 0.0)          # bias + ReLU in f32
        h = jnp.dot(h1.astype(wdt), w2_ref[j],
                    preferred_element_type=jnp.float32)
        h = h + b2_ref[j]

    if not single_layer_block:
        h_ref[...] = h

    # Final Linear(D, 1) at the last layer block, as a lane reduction
    # (VPU/XLU, keeps the MXU free).  Broadcast over 128 lanes so the output
    # store is lane-dense; the wrapper slices column 0.
    @pl.when(lblk == pl.num_programs(1) - 1)
    def _():
        out = jnp.sum(h * wf_ref[...], axis=-1, keepdims=True) + bf_ref[0, 0]
        o_ref[...] = jnp.broadcast_to(out, o_ref.shape).astype(o_ref.dtype)


def bigger_nn_forward(x, params, *, n, weights_dtype=jnp.bfloat16, tb=None,
                      layers_per_step=None):
    """x: (B, D) float32.  params: stacked weights (see init_params). -> (B, 1)."""
    B, D = x.shape
    d_pad = _round_up(D, _LANES)
    w_itemsize = jnp.dtype(weights_dtype).itemsize

    # --- batch tile: large for weight reuse, but >= 2 tiles when the batch
    # allows so the "parallel" axis feeds both v7x TensorCores. ---
    if tb is None:
        b8 = _round_up(B, _SUBLANES)
        tb = min(512, b8)
        if b8 >= 2 * _SUBLANES and tb > b8 // 2:
            tb = _round_up(b8 // 2, _SUBLANES)
    b_pad = _round_up(B, tb)
    num_btiles = b_pad // tb

    # --- layer blocking: keep the whole weight stack VMEM-resident (DMA'd
    # once total) when it fits a conservative 16 MiB budget; otherwise stream
    # the largest divisor-of-n block of layers per grid step. ---
    per_layer_bytes = 2 * d_pad * d_pad * w_itemsize + 2 * d_pad * 4
    weight_budget = 16 * 1024 * 1024
    if layers_per_step is None:
        lb_fit = max(1, int(weight_budget // (2 * per_layer_bytes)))  # x2 dbuf
        if lb_fit >= n:
            lb = n
        else:
            lb = max(d for d in range(1, lb_fit + 1) if n % d == 0)
    else:
        lb = int(layers_per_step)
        assert n % lb == 0, "layers_per_step must divide n"
    n_blocks = n // lb
    single_layer_block = (n_blocks == 1)

    # --- zero-pad to MXU/vreg-friendly shapes (once, in plain JAX).  Padding
    # is numerically inert: padded weight/bias columns stay zero through
    # ReLU, padded batch rows are sliced off. ---
    xp = jnp.zeros((b_pad, d_pad), jnp.float32).at[:B, :D].set(
        x.astype(jnp.float32))
    w1 = jnp.zeros((n, d_pad, d_pad), jnp.float32).at[:, :D, :D].set(
        params["w1t"]).astype(weights_dtype)
    w2 = jnp.zeros((n, d_pad, d_pad), jnp.float32).at[:, :D, :D].set(
        params["w2t"]).astype(weights_dtype)
    b1 = jnp.zeros((n, 1, d_pad), jnp.float32).at[:, :, :D].set(params["b1"])
    b2 = jnp.zeros((n, 1, d_pad), jnp.float32).at[:, :, :D].set(params["b2"])
    wrow = jnp.zeros((1, d_pad), jnp.float32).at[:, :D].set(params["wft"].T)
    bf = params["bf"].astype(jnp.float32)                      # (1, 1) -> SMEM

    grid = (num_btiles, n_blocks)

    # --- VMEM budget derived from actual buffer sizes, generation-aware cap.
    vmem_needed = (
        2 * tb * d_pad * 4                        # x tile (double-buffered)
        + 4 * lb * d_pad * d_pad * w_itemsize     # w1+w2 blocks (double-buffered)
        + 4 * lb * d_pad * 4                      # b1+b2 blocks (double-buffered)
        + 2 * d_pad * 4                           # final projection row
        + tb * d_pad * 4                          # h scratch
        + 2 * tb * _LANES * 4)                    # output tile (double-buffered)
    vmem_limit = min(max(2 * vmem_needed, 32 * 1024 * 1024), _vmem_cap_bytes())

    # --- cost estimate: weights are re-streamed once per batch tile unless
    # the whole stack is resident (n_blocks == 1). ---
    weight_stream_factor = 1 if single_layer_block else num_btiles
    flops = 2 * b_pad * d_pad * d_pad * 2 * n + 2 * b_pad * d_pad
    bytes_accessed = (
        (w1.size + w2.size) * w_itemsize * weight_stream_factor
        + (b1.size + b2.size) * 4 * weight_stream_factor
        + (wrow.size + xp.size) * 4
        + b_pad * _LANES * 4)

    kernel = functools.partial(_bigger_nn_kernel, lb=lb,
                               single_layer_block=single_layer_block)

    out = pl.pallas_call(
        kernel,
        out_shape=jax.ShapeDtypeStruct((b_pad, _LANES), jnp.float32),
        grid_spec=pltpu.PrefetchScalarGridSpec(
            num_scalar_prefetch=0,
            grid=grid,
            in_specs=[
                # x: one batch tile, resident across the layer-block axis.
                pl.BlockSpec((tb, d_pad), lambda b, l: (b, 0)),
                # lb layers of weights/biases per grid step, streamed along
                # the layer-block axis (double-buffered by the pipeline; when
                # n_blocks == 1 the block index is constant -> DMA'd once).
                pl.BlockSpec((lb, d_pad, d_pad), lambda b, l: (l, 0, 0)),
                pl.BlockSpec((lb, 1, d_pad), lambda b, l: (l, 0, 0)),
                pl.BlockSpec((lb, d_pad, d_pad), lambda b, l: (l, 0, 0)),
                pl.BlockSpec((lb, 1, d_pad), lambda b, l: (l, 0, 0)),
                # final projection row: tiny, resident.
                pl.BlockSpec((1, d_pad), lambda b, l: (0, 0)),
                # final scalar bias lives in SMEM (no padded VMEM tile / DMA).
                pl.BlockSpec(memory_space=pltpu.MemorySpace.SMEM),
            ],
            # Lane-dense output block; same block across the layer-block axis,
            # written only at the last layer block.
            out_specs=pl.BlockSpec((tb, _LANES), lambda b, l: (b, 0)),
            scratch_shapes=[pltpu.VMEM((tb, d_pad), jnp.float32)],
        ),
        compiler_params=pltpu.CompilerParams(
            dimension_semantics=("parallel", "arbitrary"),
            vmem_limit_bytes=int(vmem_limit),
        ),
        cost_estimate=pl.CostEstimate(
            flops=int(flops), transcendentals=0,
            bytes_accessed=int(bytes_accessed)),
    )(xp, w1, b1, w2, b2, wrow, bf)

    return out[:B, :1]


def init_params(key, n, D):
    """Deterministic synthetic init (shapes match torch module __init__)."""
    keys = jax.random.split(key, 4 * n + 2)
    scale = 1.0 / jnp.sqrt(D)
    w1, b1, w2, b2 = [], [], [], []
    for i in range(n):
        k1, k2, k3, k4 = keys[4 * i:4 * i + 4]
        # torch Linear stores W as (out, in); we keep the transposed (in, out)
        # copy so the kernel does h @ W^T directly.
        w1.append(jax.random.uniform(k1, (D, D), jnp.float32, -scale, scale))
        b1.append(jax.random.uniform(k2, (1, D), jnp.float32, -scale, scale))
        w2.append(jax.random.uniform(k3, (D, D), jnp.float32, -scale, scale))
        b2.append(jax.random.uniform(k4, (1, D), jnp.float32, -scale, scale))
    kf_w, kf_b = keys[-2], keys[-1]
    return {
        "w1t": jnp.stack(w1),                                   # (n, D, D)
        "b1": jnp.stack(b1),                                    # (n, 1, D)
        "w2t": jnp.stack(w2),                                   # (n, D, D)
        "b2": jnp.stack(b2),                                    # (n, 1, D)
        "wft": jax.random.uniform(kf_w, (D, 1), jnp.float32, -scale, scale),
        "bf": jax.random.uniform(kf_b, (1, 1), jnp.float32, -scale, scale),
    }


def reference_forward(x, params, *, n, weights_dtype=jnp.float32):
    """Plain-JAX reference mirroring the torch forward (and the kernel's
    bf16 matmul-input casting with f32 accumulation when enabled)."""
    def mm(a, w):
        return jnp.dot(a.astype(weights_dtype), w.astype(weights_dtype),
                       preferred_element_type=jnp.float32)

    h = x.astype(jnp.float32)
    for i in range(n):
        h = jnp.maximum(mm(h, params["w1t"][i]) + params["b1"][i], 0.0)
        h = mm(h, params["w2t"][i]) + params["b2"][i]
    # Final projection stays f32 in the kernel as well.
    return h @ params["wft"] + params["bf"]


if __name__ == "__main__":
    key = jax.random.PRNGKey(0)

    # --- main config: n=3, D=32, B=8 (resident weights, single layer block) ---
    n, D, B = 3, 32, 8
    kx, kp = jax.random.split(key)
    x = jax.random.normal(kx, (B, D), jnp.float32)
    params = init_params(kp, n, D)

    # f32 weights: tight check against the plain-JAX reference.
    out_f32 = jax.block_until_ready(
        bigger_nn_forward(x, params, n=n, weights_dtype=jnp.float32))
    ref_f32 = reference_forward(x, params, n=n)
    assert out_f32.shape == (B, 1)
    assert jnp.allclose(out_f32, ref_f32, atol=1e-4, rtol=1e-4)

    # bf16 weight streaming (the default): looser check against a reference
    # that mirrors the bf16 matmul inputs / f32 accumulation.
    out_bf = jax.block_until_ready(bigger_nn_forward(x, params, n=n))
    ref_bf = reference_forward(x, params, n=n, weights_dtype=jnp.bfloat16)
    assert jnp.allclose(out_bf, ref_bf, atol=1e-2, rtol=1e-2)

    # --- second config exercising multi batch tiles + layer streaming ---
    n2, D2, B2 = 4, 32, 24
    kx2, kp2 = jax.random.split(jax.random.PRNGKey(1))
    x2 = jax.random.normal(kx2, (B2, D2), jnp.float32)
    params2 = init_params(kp2, n2, D2)
    out2 = jax.block_until_ready(
        bigger_nn_forward(x2, params2, n=n2, layers_per_step=2))
    ref2 = reference_forward(x2, params2, n=n2, weights_dtype=jnp.bfloat16)
    assert out2.shape == (B2, 1)
    assert jnp.allclose(out2, ref2, atol=1e-2, rtol=1e-2)

    print("KERNEL_OK")
</pallas_src>

<mosaic_0001>
module attributes {stable_mosaic.version = 11 : i64} {
  func.func @_bigger_nn_kernel(%arg0: i32, %arg1: i32, %arg2: memref<8x128xf32, #tpu.memory_space<vmem>>, %arg3: memref<3x128x128xf32, #tpu.memory_space<vmem>>, %arg4: memref<3x1x128xf32, #tpu.memory_space<vmem>>, %arg5: memref<3x128x128xf32, #tpu.memory_space<vmem>>, %arg6: memref<3x1x128xf32, #tpu.memory_space<vmem>>, %arg7: memref<1x128xf32, #tpu.memory_space<vmem>>, %arg8: memref<1x1xf32, #tpu.memory_space<smem>>, %arg9: memref<8x128xf32, #tpu.memory_space<vmem>>, %arg10: memref<8x128xf32, #tpu.memory_space<vmem>>) attributes {dimension_semantics = [#tpu.dimension_semantics<parallel>, #tpu.dimension_semantics<arbitrary>], iteration_bounds = array<i64: 1, 1>, scalar_prefetch = 0 : i64, scratch_operands = 1 : i64, tpu.core_type = #tpu.core_type<tc>, window_params = [{transform_indices = @transform_0, window_bounds = array<i64: 8, 128>}, {transform_indices = @transform_1, window_bounds = array<i64: 3, 128, 128>}, {transform_indices = @transform_2, window_bounds = array<i64: 3, 1, 128>}, {transform_indices = @transform_3, window_bounds = array<i64: 3, 128, 128>}, {transform_indices = @transform_4, window_bounds = array<i64: 3, 1, 128>}, {pipeline_mode = #tpu.pipeline_mode<synchronous>, transform_indices = @transform_5, window_bounds = array<i64: 1, 128>}, {transform_indices = @transform_6, window_bounds = array<i64: 1, 1>}, {transform_indices = @transform_7, window_bounds = array<i64: 8, 128>}]} {
    %c0 = arith.constant 0 : index
    %c0_0 = arith.constant 0 : index
    %0 = vector.load %arg2[%c0, %c0_0] : memref<8x128xf32, #tpu.memory_space<vmem>>, vector<8x128xf32>
    %c0_1 = arith.constant 0 : index
    %c0_2 = arith.constant 0 : index
    %c0_3 = arith.constant 0 : index
    %1 = vector.load %arg3[%c0_1, %c0_2, %c0_3] : memref<3x128x128xf32, #tpu.memory_space<vmem>>, vector<1x128x128xf32>
    %2 = vector.shape_cast %1 : vector<1x128x128xf32> to vector<128x128xf32>
    %cst = arith.constant dense<0.000000e+00> : vector<8x128xf32>
    %3 = tpu.matmul %0, %2, %cst {dimension_numbers = #tpu.dot_dimension_numbers<[1], [0], [0], [1], [0, 0, 1, 1], [], []>} : vector<8x128xf32>, vector<128x128xf32>, vector<8x128xf32> -> vector<8x128xf32>
    %c0_4 = arith.constant 0 : index
    %c0_5 = arith.constant 0 : index
    %c0_6 = arith.constant 0 : index
    %4 = vector.load %arg4[%c0_4, %c0_5, %c0_6] : memref<3x1x128xf32, #tpu.memory_space<vmem>>, vector<1x1x128xf32>
    %5 = vector.shape_cast %4 : vector<1x1x128xf32> to vector<1x128xf32>
    %6 = vector.broadcast %5 : vector<1x128xf32> to vector<8x128xf32>
    %7 = arith.addf %3, %6 : vector<8x128xf32>
    %cst_7 = arith.constant 0.000000e+00 : f32
    %8 = vector.broadcast %cst_7 : f32 to vector<8x128xf32>
    %9 = arith.maximumf %7, %8 : vector<8x128xf32>
    %c0_8 = arith.constant 0 : index
    %c0_9 = arith.constant 0 : index
    %c0_10 = arith.constant 0 : index
    %10 = vector.load %arg5[%c0_8, %c0_9, %c0_10] : memref<3x128x128xf32, #tpu.memory_space<vmem>>, vector<1x128x128xf32>
    %11 = vector.shape_cast %10 : vector<1x128x128xf32> to vector<128x128xf32>
    %cst_11 = arith.constant dense<0.000000e+00> : vector<8x128xf32>
    %12 = tpu.matmul %9, %11, %cst_11 {dimension_numbers = #tpu.dot_dimension_numbers<[1], [0], [0], [1], [0, 0, 1, 1], [], []>} : vector<8x128xf32>, vector<128x128xf32>, vector<8x128xf32> -> vector<8x128xf32>
    %c0_12 = arith.constant 0 : index
    %c0_13 = arith.constant 0 : index
    %c0_14 = arith.constant 0 : index
    %13 = vector.load %arg6[%c0_12, %c0_13, %c0_14] : memref<3x1x128xf32, #tpu.memory_space<vmem>>, vector<1x1x128xf32>
    %14 = vector.shape_cast %13 : vector<1x1x128xf32> to vector<1x128xf32>
    %15 = vector.broadcast %14 : vector<1x128xf32> to vector<8x128xf32>
    %16 = arith.addf %12, %15 : vector<8x128xf32>
    %c1 = arith.constant 1 : index
    %c0_15 = arith.constant 0 : index
    %c0_16 = arith.constant 0 : index
    %17 = vector.load %arg3[%c1, %c0_15, %c0_16] : memref<3x128x128xf32, #tpu.memory_space<vmem>>, vector<1x128x128xf32>
    %18 = vector.shape_cast %17 : vector<1x128x128xf32> to vector<128x128xf32>
    %cst_17 = arith.constant dense<0.000000e+00> : vector<8x128xf32>
    %19 = tpu.matmul %16, %18, %cst_17 {dimension_numbers = #tpu.dot_dimension_numbers<[1], [0], [0], [1], [0, 0, 1, 1], [], []>} : vector<8x128xf32>, vector<128x128xf32>, vector<8x128xf32> -> vector<8x128xf32>
    %c1_18 = arith.constant 1 : index
    %c0_19 = arith.constant 0 : index
    %c0_20 = arith.constant 0 : index
    %20 = vector.load %arg4[%c1_18, %c0_19, %c0_20] : memref<3x1x128xf32, #tpu.memory_space<vmem>>, vector<1x1x128xf32>
    %21 = vector.shape_cast %20 : vector<1x1x128xf32> to vector<1x128xf32>
    %22 = vector.broadcast %21 : vector<1x128xf32> to vector<8x128xf32>
    %23 = arith.addf %19, %22 : vector<8x128xf32>
    %cst_21 = arith.constant 0.000000e+00 : f32
    %24 = vector.broadcast %cst_21 : f32 to vector<8x128xf32>
    %25 = arith.maximumf %23, %24 : vector<8x128xf32>
    %c1_22 = arith.constant 1 : index
    %c0_23 = arith.constant 0 : index
    %c0_24 = arith.constant 0 : index
    %26 = vector.load %arg5[%c1_22, %c0_23, %c0_24] : memref<3x128x128xf32, #tpu.memory_space<vmem>>, vector<1x128x128xf32>
    %27 = vector.shape_cast %26 : vector<1x128x128xf32> to vector<128x128xf32>
    %cst_25 = arith.constant dense<0.000000e+00> : vector<8x128xf32>
    %28 = tpu.matmul %25, %27, %cst_25 {dimension_numbers = #tpu.dot_dimension_numbers<[1], [0], [0], [1], [0, 0, 1, 1], [], []>} : vector<8x128xf32>, vector<128x128xf32>, vector<8x128xf32> -> vector<8x128xf32>
    %c1_26 = arith.constant 1 : index
    %c0_27 = arith.constant 0 : index
    %c0_28 = arith.constant 0 : index
    %29 = vector.load %arg6[%c1_26, %c0_27, %c0_28] : memref<3x1x128xf32, #tpu.memory_space<vmem>>, vector<1x1x128xf32>
    %30 = vector.shape_cast %29 : vector<1x1x128xf32> to vector<1x128xf32>
    %31 = vector.broadcast %30 : vector<1x128xf32> to vector<8x128xf32>
    %32 = arith.addf %28, %31 : vector<8x128xf32>
    %c2 = arith.constant 2 : index
    %c0_29 = arith.constant 0 : index
    %c0_30 = arith.constant 0 : index
    %33 = vector.load %arg3[%c2, %c0_29, %c0_30] : memref<3x128x128xf32, #tpu.memory_space<vmem>>, vector<1x128x128xf32>
    %34 = vector.shape_cast %33 : vector<1x128x128xf32> to vector<128x128xf32>
    %cst_31 = arith.constant dense<0.000000e+00> : vector<8x128xf32>
    %35 = tpu.matmul %32, %34, %cst_31 {dimension_numbers = #tpu.dot_dimension_numbers<[1], [0], [0], [1], [0, 0, 1, 1], [], []>} : vector<8x128xf32>, vector<128x128xf32>, vector<8x128xf32> -> vector<8x128xf32>
    %c2_32 = arith.constant 2 : index
    %c0_33 = arith.constant 0 : index
    %c0_34 = arith.constant 0 : index
    %36 = vector.load %arg4[%c2_32, %c0_33, %c0_34] : memref<3x1x128xf32, #tpu.memory_space<vmem>>, vector<1x1x128xf32>
    %37 = vector.shape_cast %36 : vector<1x1x128xf32> to vector<1x128xf32>
    %38 = vector.broadcast %37 : vector<1x128xf32> to vector<8x128xf32>
    %39 = arith.addf %35, %38 : vector<8x128xf32>
    %cst_35 = arith.constant 0.000000e+00 : f32
    %40 = vector.broadcast %cst_35 : f32 to vector<8x128xf32>
    %41 = arith.maximumf %39, %40 : vector<8x128xf32>
    %c2_36 = arith.constant 2 : index
    %c0_37 = arith.constant 0 : index
    %c0_38 = arith.constant 0 : index
    %42 = vector.load %arg5[%c2_36, %c0_37, %c0_38] : memref<3x128x128xf32, #tpu.memory_space<vmem>>, vector<1x128x128xf32>
    %43 = vector.shape_cast %42 : vector<1x128x128xf32> to vector<128x128xf32>
    %cst_39 = arith.constant dense<0.000000e+00> : vector<8x128xf32>
    %44 = tpu.matmul %41, %43, %cst_39 {dimension_numbers = #tpu.dot_dimension_numbers<[1], [0], [0], [1], [0, 0, 1, 1], [], []>} : vector<8x128xf32>, vector<128x128xf32>, vector<8x128xf32> -> vector<8x128xf32>
    %c2_40 = arith.constant 2 : index
    %c0_41 = arith.constant 0 : index
    %c0_42 = arith.constant 0 : index
    %45 = vector.load %arg6[%c2_40, %c0_41, %c0_42] : memref<3x1x128xf32, #tpu.memory_space<vmem>>, vector<1x1x128xf32>
    %46 = vector.shape_cast %45 : vector<1x1x128xf32> to vector<1x128xf32>
    %47 = vector.broadcast %46 : vector<1x128xf32> to vector<8x128xf32>
    %48 = arith.addf %44, %47 : vector<8x128xf32>
    %c0_i32 = arith.constant 0 : i32
    %49 = arith.cmpi eq, %arg1, %c0_i32 : i32
    %50 = arith.extui %49 : i1 to i32
    %c0_i32_43 = arith.constant 0 : i32
    %51 = arith.cmpi ne, %50, %c0_i32_43 : i32
    scf.if %51 {
      %c0_44 = arith.constant 0 : index
      %c0_45 = arith.constant 0 : index
      %52 = vector.load %arg7[%c0_44, %c0_45] : memref<1x128xf32, #tpu.memory_space<vmem>>, vector<1x128xf32>
      %53 = vector.broadcast %52 : vector<1x128xf32> to vector<8x128xf32>
      %54 = arith.mulf %48, %53 : vector<8x128xf32>
      %cst_46 = arith.constant dense<0.000000e+00> : vector<8xf32>
      %55 = vector.multi_reduction <add>, %54, %cst_46 [1] : vector<8x128xf32> to vector<8xf32>
      %56 = vector.shape_cast %55 : vector<8xf32> to vector<8x1xf32>
      %c0_47 = arith.constant 0 : index
      %c0_48 = arith.constant 0 : index
      %57 = memref.load %arg8[%c0_47, %c0_48] : memref<1x1xf32, #tpu.memory_space<smem>>
      %58 = vector.broadcast %57 : f32 to vector<8x1xf32>
      %59 = arith.addf %56, %58 : vector<8x1xf32>
      %60 = vector.shape_cast %59 : vector<8x1xf32> to vector<8x1xf32>
      %61 = vector.broadcast %60 : vector<8x1xf32> to vector<8x128xf32>
      %c0_49 = arith.constant 0 : index
      %c0_50 = arith.constant 0 : index
      %62 = vector.load %arg9[%c0_49, %c0_50] : memref<8x128xf32, #tpu.memory_space<vmem>>, vector<8x128xf32>
      tpu.vector_store %arg9[%c0_49, %c0_50], %61 {strides = array<i32>} : memref<8x128xf32, #tpu.memory_space<vmem>>, vector<8x128xf32>,
    } else {
    }
    return
  }
  func.func @transform_0(%arg0: i32, %arg1: i32) -> (i32, i32) {
    %c0_i32 = arith.constant 0 : i32
    %c0_i32_0 = arith.constant 0 : i32
    return %arg0, %c0_i32 : i32, i32
  }
  func.func @transform_1(%arg0: i32, %arg1: i32) -> (i32, i32, i32) {
    %c0_i32 = arith.constant 0 : i32
    %c0_i32_0 = arith.constant 0 : i32
    %c0_i32_1 = arith.constant 0 : i32
    return %arg1, %c0_i32, %c0_i32_0 : i32, i32, i32
  }
  func.func @transform_2(%arg0: i32, %arg1: i32) -> (i32, i32, i32) {
    %c0_i32 = arith.constant 0 : i32
    %c0_i32_0 = arith.constant 0 : i32
    %c0_i32_1 = arith.constant 0 : i32
    return %arg1, %c0_i32, %c0_i32_0 : i32, i32, i32
  }
  func.func @transform_3(%arg0: i32, %arg1: i32) -> (i32, i32, i32) {
    %c0_i32 = arith.constant 0 : i32
    %c0_i32_0 = arith.constant 0 : i32
    %c0_i32_1 = arith.constant 0 : i32
    return %arg1, %c0_i32, %c0_i32_0 : i32, i32, i32
  }
  func.func @transform_4(%arg0: i32, %arg1: i32) -> (i32, i32, i32) {
    %c0_i32 = arith.constant 0 : i32
    %c0_i32_0 = arith.constant 0 : i32
    %c0_i32_1 = arith.constant 0 : i32
    return %arg1, %c0_i32, %c0_i32_0 : i32, i32, i32
  }
  func.func @transform_5(%arg0: i32, %arg1: i32) -> (i32, i32) {
    %c0_i32 = arith.constant 0 : i32
    %c0_i32_0 = arith.constant 0 : i32
    %c0_i32_1 = arith.constant 0 : i32
    return %c0_i32, %c0_i32_0 : i32, i32
  }
  func.func @transform_6(%arg0: i32, %arg1: i32) -> (i32, i32) {
    %c0_i32 = arith.constant 0 : i32
    %c0_i32_0 = arith.constant 0 : i32
    %c0_i32_1 = arith.constant 0 : i32
    return %c0_i32, %c0_i32_0 : i32, i32
  }
  func.func @transform_7(%arg0: i32, %arg1: i32) -> (i32, i32) {
    %c0_i32 = arith.constant 0 : i32
    %c0_i32_0 = arith.constant 0 : i32
    return %arg0, %c0_i32 : i32, i32
  }
}

</mosaic_0001>

<llo_original>
// kernel: tpu_custom_call.1
$region0: #{tpu_custom_call.1}
  #allocation0 [shape = 'u32[]', space=smem, size = 0x4, offset = 0x4, fixed_abs, tag = 'smem constant byte address 0x4 - core index']
  #allocation1 [shape = 'u32[72,128]{1,0:T(1,128)}', space=vmem, size = 0x9000, scoped, tag = 'internal scratch']
  #allocation2 [shape = 'f32[8,128]{1,0:T(8,128)}', space=vmem, size = 0x1000, scoped, tag = 'scratch operand']
  #allocation3 [shape = 'f32[1,1]{1,0:T(1,128)S(6)}', space=smem, size = 0x200, scoped, tag = 'scoped memory for tpu_custom_call.1']
  %s0 = inlined_call_operand.hbm [shape: f32[8,128], index: 0, kind: input, shape index: {}]
  %s1 = inlined_call_operand.hbm [shape: f32[3,128,128], index: 1, kind: input, shape index: {}]
  %s2 = inlined_call_operand.vmem [shape: f32[3,1,128], index: 2, kind: input, shape index: {}]
  %s3 = inlined_call_operand.hbm [shape: f32[3,128,128], index: 3, kind: input, shape index: {}]
  %s4 = inlined_call_operand.hbm [shape: f32[3,1,128], index: 4, kind: input, shape index: {}]
  %s5 = inlined_call_operand.vmem [shape: f32[1,128], index: 5, kind: input, shape index: {}]
  %s6 = inlined_call_operand.<no memory space> [shape: f32[1,1], index: 6, kind: input, shape index: {}]
  %s7 = inlined_call_operand.hbm [shape: f32[8,128], index: 7, kind: output, shape index: {}]
  %s8 = sld [smem:[#allocation0]]
  $region58: #{tpu_custom_call.1} parent=0
    _
  %s10 = ssub.s32 1, %s8
  %s11 = scalar_select 0, %s10, %s8
  %12 = sst [smem:[#allocation3]] %s6
  $region1: #{tpu_custom_call.1} parent=0
    #allocation4 [shape = 'u8[4096]{0}', space=vmem, size = 0x1000, scoped, tag = 'input window, operand 0, single buffered']
    #allocation5 [shape = 's32[1]{0}', space=sflag, size = 0x4, scoped, tag = 'scoped memory for tpu_custom_call.1']
    #allocation6 [shape = 's32[1]{0}', space=sflag, size = 0x4, scoped, tag = 'scoped memory for tpu_custom_call.1']
    #allocation7 [shape = 'u8[196608]{0}', space=vmem, size = 0x30000, scoped, tag = 'input window, operand 1, single buffered']
    #allocation8 [shape = 's32[1]{0}', space=sflag, size = 0x4, scoped, tag = 'scoped memory for tpu_custom_call.1']
    #allocation9 [shape = 'u8[196608]{0}', space=vmem, size = 0x30000, scoped, tag = 'input window, operand 3, single buffered']
    #allocation10 [shape = 'u8[1536]{0}', space=vmem, size = 0x800, scoped, tag = 'input window, operand 4, single buffered']
    #allocation11 [shape = 's32[1]{0}', space=sflag, size = 0x4, scoped, tag = 'scoped memory for tpu_custom_call.1']
    #allocation12 [shape = 'u8[4096]{0}', space=vmem, size = 0x1000, scoped, tag = 'output window, operand 0, single buffered']
    %13 = vsyncpa [#allocation5], 0
    %14 = vsyncpa [#allocation8], 0
    %15 = vsyncpa [#allocation11], 0
    %16 = vsyncpa [#allocation6], 0
    // Predicated region
    $region2: #{tpu_custom_call.1} parent=1 // pred_check
      _
    $region3: #{tpu_custom_call.1} parent=1 // pred_check_branch
      %18 = sbr.rel (0) target = $region5
    $region4: #{tpu_custom_call.1} parent=1 // pred_region
      %20 = vsyncadd [#allocation5], 0
      %s22 = sshll.u32 %s0, 4
      %s23 = int_to_ptr.hbm [resolvable:$true] %s22
      %s24 = sshll.u32 [#allocation4], 4
      %s25 = int_to_ptr.vmem [resolvable:$true] %s24
      %27 = dma.hbm_to_vmem [thread:$0]  %s23, 128, %s25, [#allocation5]
    $region5: #{tpu_custom_call.1} parent=1 // pred_fallthru
      _
    // Predicated region
    $region6: #{tpu_custom_call.1} parent=1 // pred_check
      _
    $region7: #{tpu_custom_call.1} parent=1 // pred_check_branch
      %29 = sbr.rel (0) target = $region9
    $region8: #{tpu_custom_call.1} parent=1 // pred_region
      %31 = vsyncadd [#allocation8], 0
      %s32 = sshll.u32 %s1, 4
      %s33 = int_to_ptr.hbm [resolvable:$true] %s32
      %s34 = sshll.u32 [#allocation7], 4
      %s35 = int_to_ptr.vmem [resolvable:$true] %s34
      %40 = dma.hbm_to_vmem [thread:$0]  %s33, 6144, %s35, [#allocation8], 128, 128, 8
    $region9: #{tpu_custom_call.1} parent=1 // pred_fallthru
      _
    // Predicated region
    $region10: #{tpu_custom_call.1} parent=1 // pred_check
      _
    $region11: #{tpu_custom_call.1} parent=1 // pred_check_branch
      %42 = sbr.rel (0) target = $region13
    $region12: #{tpu_custom_call.1} parent=1 // pred_region
      _
    $region13: #{tpu_custom_call.1} parent=1 // pred_fallthru
      _
    // Predicated region
    $region14: #{tpu_custom_call.1} parent=1 // pred_check
      _
    $region15: #{tpu_custom_call.1} parent=1 // pred_check_branch
      %44 = sbr.rel (0) target = $region17
    $region16: #{tpu_custom_call.1} parent=1 // pred_region
      %46 = vsyncadd [#allocation8], 0
      %s47 = sshll.u32 %s3, 4
      %s48 = int_to_ptr.hbm [resolvable:$true] %s47
      %s49 = sshll.u32 [#allocation9], 4
      %s50 = int_to_ptr.vmem [resolvable:$true] %s49
      %55 = dma.hbm_to_vmem [thread:$0]  %s48, 6144, %s50, [#allocation8], 128, 128, 8
    $region17: #{tpu_custom_call.1} parent=1 // pred_fallthru
      _
    // Predicated region
    $region18: #{tpu_custom_call.1} parent=1 // pred_check
      _
    $region19: #{tpu_custom_call.1} parent=1 // pred_check_branch
      %57 = sbr.rel (0) target = $region21
    $region20: #{tpu_custom_call.1} parent=1 // pred_region
      %59 = vsyncadd [#allocation11], 0
      %s60 = sshll.u32 %s4, 4
      %s61 = int_to_ptr.hbm [resolvable:$true] %s60
      %s62 = sshll.u32 [#allocation10], 4
      %s63 = int_to_ptr.vmem [resolvable:$true] %s62
      %68 = dma.hbm_to_vmem [thread:$0]  %s61, 48, %s63, [#allocation11], 16, 16, 1
    $region21: #{tpu_custom_call.1} parent=1 // pred_fallthru
      _
    // Predicated region
    $region22: #{tpu_custom_call.1} parent=1 // pred_check
      _
    $region23: #{tpu_custom_call.1} parent=1 // pred_check_branch
      %70 = sbr.rel (0) target = $region25
    $region24: #{tpu_custom_call.1} parent=1 // pred_region
      _
    $region25: #{tpu_custom_call.1} parent=1 // pred_fallthru
      _
    // Predicated region
    $region26: #{tpu_custom_call.1} parent=1 // pred_check
      _
    $region27: #{tpu_custom_call.1} parent=1 // pred_check_branch
      %72 = sbr.rel (0) target = $region29
    $region28: #{tpu_custom_call.1} parent=1 // pred_region
      _
    $region29: #{tpu_custom_call.1} parent=1 // pred_fallthru
      _
    // Predicated region
    $region30: #{tpu_custom_call.1} parent=1 // pred_check
      _
    $region31: #{tpu_custom_call.1} parent=1 // pred_check_branch
      %74 = sbr.rel (0) target = $region33
    $region32: #{tpu_custom_call.1} parent=1 // pred_region
      %76 = dma.done [#allocation5], 128
    $region33: #{tpu_custom_call.1} parent=1 // pred_fallthru
      _
    // Predicated region
    $region34: #{tpu_custom_call.1} parent=1 // pred_check
      _
    $region35: #{tpu_custom_call.1} parent=1 // pred_check_branch
      %78 = sbr.rel (0) target = $region37
    $region36: #{tpu_custom_call.1} parent=1 // pred_region
      %80 = dma.done [#allocation8], 6144
    $region37: #{tpu_custom_call.1} parent=1 // pred_fallthru
      _
    // Predicated region
    $region38: #{tpu_custom_call.1} parent=1 // pred_check
      _
    $region39: #{tpu_custom_call.1} parent=1 // pred_check_branch
      %82 = sbr.rel (0) target = $region41
    $region40: #{tpu_custom_call.1} parent=1 // pred_region
      %84 = dma.done [#allocation8], 6144
    $region41: #{tpu_custom_call.1} parent=1 // pred_fallthru
      _
    // Predicated region
    $region42: #{tpu_custom_call.1} parent=1 // pred_check
      _
    $region43: #{tpu_custom_call.1} parent=1 // pred_check_branch
      %86 = sbr.rel (0) target = $region45
    $region44: #{tpu_custom_call.1} parent=1 // pred_region
      %88 = dma.done [#allocation11], 48
    $region45: #{tpu_custom_call.1} parent=1 // pred_fallthru
      _
    %v89 = vld [vmem:[#allocation4] sm:$0xff]
    %v90 = vld [vmem:[#allocation7] sm:$0xff]
    %v91 = vld [vmem:[#allocation7 + $0x8] sm:$0xff]
    %v92 = vld [vmem:[#allocation7 + $0x10] sm:$0xff]
    %v93 = vld [vmem:[#allocation7 + $0x18] sm:$0xff]
    %v94 = vld [vmem:[#allocation7 + $0x20] sm:$0xff]
    %v95 = vld [vmem:[#allocation7 + $0x28] sm:$0xff]
    %v96 = vld [vmem:[#allocation7 + $0x30] sm:$0xff]
    %v97 = vld [vmem:[#allocation7 + $0x38] sm:$0xff]
    %v98 = vld [vmem:[#allocation7 + $0x40] sm:$0xff]
    %v99 = vld [vmem:[#allocation7 + $0x48] sm:$0xff]
    %v100 = vld [vmem:[#allocation7 + $0x50] sm:$0xff]
    %v101 = vld [vmem:[#allocation7 + $0x58] sm:$0xff]
    %v102 = vld [vmem:[#allocation7 + $0x60] sm:$0xff]
    %v103 = vld [vmem:[#allocation7 + $0x68] sm:$0xff]
    %v104 = vld [vmem:[#allocation7 + $0x70] sm:$0xff]
    %v105 = vld [vmem:[#allocation7 + $0x78] sm:$0xff]
    %v106 = vld [vmem:[%s2] sm:$0x1]
    %v108 = vperm.slane %v106, 0
    %110 = vmatpush.msra.mxu0 %v105
    %111 = vmatpush.msra.mxu0 %v104
    %112 = vmatpush.msra.mxu0 %v103
    %113 = vmatpush.msra.mxu0 %v102
    %114 = vmatpush.msra.mxu0 %v101
    %115 = vmatpush.msra.mxu0 %v100
    %116 = vmatpush.msra.mxu0 %v99
    %117 = vmatpush.msra.mxu0 %v98
    %118 = vmatpush.msra.mxu0 %v97
    %119 = vmatpush.msra.mxu0 %v96
    %120 = vmatpush.msra.mxu0 %v95
    %121 = vmatpush.msra.mxu0 %v94
    %122 = vmatpush.msra.mxu0 %v93
    %123 = vmatpush.msra.mxu0 %v92
    %124 = vmatpush.msra.mxu0 %v91
    %125 = vmatpush.msra.mxu0 %v90
    %126 = vmatmul.f32.gmra.mxu0 %v89
    %v127 = vpop.f32.mrf.mxu0
    %v128 = vadd.f32 %v108, %v127
    %129 = vdwg.mxu0
    %v130 = vmax.f32 %v128, 0.0
    %v131 = vld [vmem:[#allocation9] sm:$0xff]
    %v132 = vld [vmem:[#allocation9 + $0x8] sm:$0xff]
    %v133 = vld [vmem:[#allocation9 + $0x10] sm:$0xff]
    %v134 = vld [vmem:[#allocation9 + $0x18] sm:$0xff]
    %v135 = vld [vmem:[#allocation9 + $0x20] sm:$0xff]
    %v136 = vld [vmem:[#allocation9 + $0x28] sm:$0xff]
    %v137 = vld [vmem:[#allocation9 + $0x30] sm:$0xff]
    %v138 = vld [vmem:[#allocation9 + $0x38] sm:$0xff]
    %v139 = vld [vmem:[#allocation9 + $0x40] sm:$0xff]
    %v140 = vld [vmem:[#allocation9 + $0x48] sm:$0xff]
    %v141 = vld [vmem:[#allocation9 + $0x50] sm:$0xff]
    %v142 = vld [vmem:[#allocation9 + $0x58] sm:$0xff]
    %v143 = vld [vmem:[#allocation9 + $0x60] sm:$0xff]
    %v144 = vld [vmem:[#allocation9 + $0x68] sm:$0xff]
    %v145 = vld [vmem:[#allocation9 + $0x70] sm:$0xff]
    %v146 = vld [vmem:[#allocation9 + $0x78] sm:$0xff]
    %v147 = vld [vmem:[#allocation10] sm:$0x1]
    %v149 = vperm.slane %v147, 0
    %151 = vmatpush.msra.mxu0 %v146
    %152 = vmatpush.msra.mxu0 %v145
    %153 = vmatpush.msra.mxu0 %v144
    %154 = vmatpush.msra.mxu0 %v143
    %155 = vmatpush.msra.mxu0 %v142
    %156 = vmatpush.msra.mxu0 %v141
    %157 = vmatpush.msra.mxu0 %v140
    %158 = vmatpush.msra.mxu0 %v139
    %159 = vmatpush.msra.mxu0 %v138
    %160 = vmatpush.msra.mxu0 %v137
    %161 = vmatpush.msra.mxu0 %v136
    %162 = vmatpush.msra.mxu0 %v135
    %163 = vmatpush.msra.mxu0 %v134
    %164 = vmatpush.msra.mxu0 %v133
    %165 = vmatpush.msra.mxu0 %v132
    %166 = vmatpush.msra.mxu0 %v131
    %167 = vmatmul.f32.gmra.mxu0 %v130
    %v168 = vpop.f32.mrf.mxu0
    %v169 = vadd.f32 %v149, %v168
    %170 = vdwg.mxu0
    %s171 = scalar_lea.vmem [#allocation7], 128
    %v172 = vld [vmem:[%s171] sm:$0xff]
    %v173 = vld [vmem:[%s171 + $0x8] sm:$0xff]
    %v174 = vld [vmem:[%s171 + $0x10] sm:$0xff]
    %v175 = vld [vmem:[%s171 + $0x18] sm:$0xff]
    %v176 = vld [vmem:[%s171 + $0x20] sm:$0xff]
    %v177 = vld [vmem:[%s171 + $0x28] sm:$0xff]
    %v178 = vld [vmem:[%s171 + $0x30] sm:$0xff]
    %v179 = vld [vmem:[%s171 + $0x38] sm:$0xff]
    %v180 = vld [vmem:[%s171 + $0x40] sm:$0xff]
    %v181 = vld [vmem:[%s171 + $0x48] sm:$0xff]
    %v182 = vld [vmem:[%s171 + $0x50] sm:$0xff]
    %v183 = vld [vmem:[%s171 + $0x58] sm:$0xff]
    %v184 = vld [vmem:[%s171 + $0x60] sm:$0xff]
    %v185 = vld [vmem:[%s171 + $0x68] sm:$0xff]
    %v186 = vld [vmem:[%s171 + $0x70] sm:$0xff]
    %v187 = vld [vmem:[%s171 + $0x78] sm:$0xff]
    %s188 = scalar_lea.vmem %s2, 1
    %v189 = vld [vmem:[%s188] sm:$0x1]
    %v191 = vperm.slane %v189, 0
    %193 = vmatpush.msra.mxu0 %v187
    %194 = vmatpush.msra.mxu0 %v186
    %195 = vmatpush.msra.mxu0 %v185
    %196 = vmatpush.msra.mxu0 %v184
    %197 = vmatpush.msra.mxu0 %v183
    %198 = vmatpush.msra.mxu0 %v182
    %199 = vmatpush.msra.mxu0 %v181
    %200 = vmatpush.msra.mxu0 %v180
    %201 = vmatpush.msra.mxu0 %v179
    %202 = vmatpush.msra.mxu0 %v178
    %203 = vmatpush.msra.mxu0 %v177
    %204 = vmatpush.msra.mxu0 %v176
    %205 = vmatpush.msra.mxu0 %v175
    %206 = vmatpush.msra.mxu0 %v174
    %207 = vmatpush.msra.mxu0 %v173
    %208 = vmatpush.msra.mxu0 %v172
    %209 = vmatmul.f32.gmra.mxu0 %v169
    %v210 = vpop.f32.mrf.mxu0
    %v211 = vadd.f32 %v191, %v210
    %212 = vdwg.mxu0
    %v213 = vmax.f32 %v211, 0.0
    %s214 = scalar_lea.vmem [#allocation9], 128
    %v215 = vld [vmem:[%s214] sm:$0xff]
    %v216 = vld [vmem:[%s214 + $0x8] sm:$0xff]
    %v217 = vld [vmem:[%s214 + $0x10] sm:$0xff]
    %v218 = vld [vmem:[%s214 + $0x18] sm:$0xff]
    %v219 = vld [vmem:[%s214 + $0x20] sm:$0xff]
    %v220 = vld [vmem:[%s214 + $0x28] sm:$0xff]
    %v221 = vld [vmem:[%s214 + $0x30] sm:$0xff]
    %v222 = vld [vmem:[%s214 + $0x38] sm:$0xff]
    %v223 = vld [vmem:[%s214 + $0x40] sm:$0xff]
    %v224 = vld [vmem:[%s214 + $0x48] sm:$0xff]
    %v225 = vld [vmem:[%s214 + $0x50] sm:$0xff]
    %v226 = vld [vmem:[%s214 + $0x58] sm:$0xff]
    %v227 = vld [vmem:[%s214 + $0x60] sm:$0xff]
    %v228 = vld [vmem:[%s214 + $0x68] sm:$0xff]
    %v229 = vld [vmem:[%s214 + $0x70] sm:$0xff]
    %v230 = vld [vmem:[%s214 + $0x78] sm:$0xff]
    %s231 = scalar_lea.vmem [#allocation10], 1
    %v232 = vld [vmem:[%s231] sm:$0x1]
    %v234 = vperm.slane %v232, 0
    %236 = vmatpush.msra.mxu0 %v230
    %237 = vmatpush.msra.mxu0 %v229
    %238 = vmatpush.msra.mxu0 %v228
    %239 = vmatpush.msra.mxu0 %v227
    %240 = vmatpush.msra.mxu0 %v226
    %241 = vmatpush.msra.mxu0 %v225
    %242 = vmatpush.msra.mxu0 %v224
    %243 = vmatpush.msra.mxu0 %v223
    %244 = vmatpush.msra.mxu0 %v222
    %245 = vmatpush.msra.mxu0 %v221
    %246 = vmatpush.msra.mxu0 %v220
    %247 = vmatpush.msra.mxu0 %v219
    %248 = vmatpush.msra.mxu0 %v218
    %249 = vmatpush.msra.mxu0 %v217
    %250 = vmatpush.msra.mxu0 %v216
    %251 = vmatpush.msra.mxu0 %v215
    %252 = vmatmul.f32.gmra.mxu0 %v213
    %v253 = vpop.f32.mrf.mxu0
    %v254 = vadd.f32 %v234, %v253
    %255 = vdwg.mxu0
    %s256 = scalar_lea.vmem [#allocation7], 256
    %v257 = vld [vmem:[%s256] sm:$0xff]
    %v258 = vld [vmem:[%s256 + $0x8] sm:$0xff]
    %v259 = vld [vmem:[%s256 + $0x10] sm:$0xff]
    %v260 = vld [vmem:[%s256 + $0x18] sm:$0xff]
    %v261 = vld [vmem:[%s256 + $0x20] sm:$0xff]
    %v262 = vld [vmem:[%s256 + $0x28] sm:$0xff]
    %v263 = vld [vmem:[%s256 + $0x30] sm:$0xff]
    %v264 = vld [vmem:[%s256 + $0x38] sm:$0xff]
    %v265 = vld [vmem:[%s256 + $0x40] sm:$0xff]
    %v266 = vld [vmem:[%s256 + $0x48] sm:$0xff]
    %v267 = vld [vmem:[%s256 + $0x50] sm:$0xff]
    %v268 = vld [vmem:[%s256 + $0x58] sm:$0xff]
    %v269 = vld [vmem:[%s256 + $0x60] sm:$0xff]
    %v270 = vld [vmem:[%s256 + $0x68] sm:$0xff]
    %v271 = vld [vmem:[%s256 + $0x70] sm:$0xff]
    %v272 = vld [vmem:[%s256 + $0x78] sm:$0xff]
    %s273 = scalar_lea.vmem %s2, 2
    %v274 = vld [vmem:[%s273] sm:$0x1]
    %v276 = vperm.slane %v274, 0
    %278 = vmatpush.msra.mxu0 %v272
    %279 = vmatpush.msra.mxu0 %v271
    %280 = vmatpush.msra.mxu0 %v270
    %281 = vmatpush.msra.mxu0 %v269
    %282 = vmatpush.msra.mxu0 %v268
    %283 = vmatpush.msra.mxu0 %v267
    %284 = vmatpush.msra.mxu0 %v266
    %285 = vmatpush.msra.mxu0 %v265
    %286 = vmatpush.msra.mxu0 %v264
    %287 = vmatpush.msra.mxu0 %v263
    %288 = vmatpush.msra.mxu0 %v262
    %289 = vmatpush.msra.mxu0 %v261
    %290 = vmatpush.msra.mxu0 %v260
    %291 = vmatpush.msra.mxu0 %v259
    %292 = vmatpush.msra.mxu0 %v258
    %293 = vmatpush.msra.mxu0 %v257
    %294 = vmatmul.f32.gmra.mxu0 %v254
    %v295 = vpop.f32.mrf.mxu0
    %v296 = vadd.f32 %v276, %v295
    %297 = vdwg.mxu0
    %v298 = vmax.f32 %v296, 0.0
    %s299 = scalar_lea.vmem [#allocation9], 256
    %v300 = vld [vmem:[%s299] sm:$0xff]
    %v301 = vld [vmem:[%s299 + $0x8] sm:$0xff]
    %v302 = vld [vmem:[%s299 + $0x10] sm:$0xff]
    %v303 = vld [vmem:[%s299 + $0x18] sm:$0xff]
    %v304 = vld [vmem:[%s299 + $0x20] sm:$0xff]
    %v305 = vld [vmem:[%s299 + $0x28] sm:$0xff]
    %v306 = vld [vmem:[%s299 + $0x30] sm:$0xff]
    %v307 = vld [vmem:[%s299 + $0x38] sm:$0xff]
    %v308 = vld [vmem:[%s299 + $0x40] sm:$0xff]
    %v309 = vld [vmem:[%s299 + $0x48] sm:$0xff]
    %v310 = vld [vmem:[%s299 + $0x50] sm:$0xff]
    %v311 = vld [vmem:[%s299 + $0x58] sm:$0xff]
    %v312 = vld [vmem:[%s299 + $0x60] sm:$0xff]
    %v313 = vld [vmem:[%s299 + $0x68] sm:$0xff]
    %v314 = vld [vmem:[%s299 + $0x70] sm:$0xff]
    %v315 = vld [vmem:[%s299 + $0x78] sm:$0xff]
    %s316 = scalar_lea.vmem [#allocation10], 2
    %v317 = vld [vmem:[%s316] sm:$0x1]
    %v319 = vperm.slane %v317, 0
    %321 = vmatpush.msra.mxu0 %v315
    %322 = vmatpush.msra.mxu0 %v314
    %323 = vmatpush.msra.mxu0 %v313
    %324 = vmatpush.msra.mxu0 %v312
    %325 = vmatpush.msra.mxu0 %v311
    %326 = vmatpush.msra.mxu0 %v310
    %327 = vmatpush.msra.mxu0 %v309
    %328 = vmatpush.msra.mxu0 %v308
    %329 = vmatpush.msra.mxu0 %v307
    %330 = vmatpush.msra.mxu0 %v306
    %331 = vmatpush.msra.mxu0 %v305
    %332 = vmatpush.msra.mxu0 %v304
    %333 = vmatpush.msra.mxu0 %v303
    %334 = vmatpush.msra.mxu0 %v302
    %335 = vmatpush.msra.mxu0 %v301
    %336 = vmatpush.msra.mxu0 %v300
    %337 = vmatmul.f32.gmra.mxu0 %v298
    %v338 = vpop.f32.mrf.mxu0
    %v339 = vadd.f32 %v319, %v338
    %340 = vdwg.mxu0
    %p341 = scmp.eq.s32.totalorder 0, 0
    // Predicated region
    $region46: #{tpu_custom_call.1} parent=1 // pred_check
      %p342 = pneg %p341
    $region47: #{tpu_custom_call.1} parent=1 // pred_check_branch
      %344 = sbr.rel (%p342) target = $region49
    $region48: #{tpu_custom_call.1} parent=1 // pred_region
      %v345 = vld [vmem:[%s5] sm:$0x1]
      %v347 = vperm.slane %v345, 0
      %v349 = vmul.f32 %v339, %v347
      %350 = vadd.xlane.f32.xlu0 %v349
      %v351 = vpop.xlane.xlu0 %350
      %s352 = sld [smem:[#allocation3]]
      %v353 = vstv %s352
      %v354 = vadd.f32 %v351, %v353
      %355 = vst [vmem:[#allocation12] sm:$0xff] %v354
    $region49: #{tpu_custom_call.1} parent=1 // pred_fallthru
      _
    // Predicated region
    $region50: #{tpu_custom_call.1} parent=1 // pred_check
      _
    $region51: #{tpu_custom_call.1} parent=1 // pred_check_branch
      %357 = sbr.rel (0) target = $region53
    $region52: #{tpu_custom_call.1} parent=1 // pred_region
      %359 = vsyncadd [#allocation6], 0
      %s361 = sshll.u32 [#allocation12], 4
      %s362 = int_to_ptr.vmem [resolvable:$true] %s361
      %s363 = sshll.u32 %s7, 4
      %s364 = int_to_ptr.hbm [resolvable:$true] %s363
      %366 = dma.vmem_to_hbm [thread:$0]  %s362, 128, %s364, [#allocation6]
    $region53: #{tpu_custom_call.1} parent=1 // pred_fallthru
      _
    // Predicated region
    $region54: #{tpu_custom_call.1} parent=1 // pred_check
      _
    $region55: #{tpu_custom_call.1} parent=1 // pred_check_branch
      %368 = sbr.rel (0) target = $region57
    $region56: #{tpu_custom_call.1} parent=1 // pred_region
      %370 = dma.done [#allocation6], 128
    $region57: #{tpu_custom_call.1} parent=1 // pred_fallthru
      _
    %371 = vsyncpa [#allocation5], 1
    %372 = vsyncpa [#allocation8], 1
    %373 = vsyncpa [#allocation11], 1
    %374 = vsyncpa [#allocation6], 1

</llo_original>
